<compile_context>
chip_gen: v5e
topology: v5e:2x2
jax: 0.10.0
libtpu: 0.0.40
codegen_flags: <defaults>
</compile_context>

<pallas_src>
import functools

import jax
import jax.numpy as jnp
from jax.experimental import pallas as pl
from jax.experimental.pallas import tpu as pltpu


def _round_up(n, m):
    return ((n + m - 1) // m) * m


# ----------------------------- Pallas kernel ------------------------------ #
def _se_kernel(x_ref, w1_ref, b1_ref, w2_ref, b2_ref, out_ref, acc_ref, *,
               hw, tq, mask_tail, inv_hw):
    t = pl.program_id(1)

    @pl.when(t == 0)
    def _():
        acc_ref[...] = jnp.zeros_like(acc_ref)

    tb, c, _ = acc_ref.shape
    base = t * tq
    if mask_tail:
        lane = jax.lax.broadcasted_iota(jnp.int32, (tb, c, 128), 2)

    # Lane-wise (VPU) partial sums: add each 128-lane chunk of this HW tile
    # into the 128-wide accumulator.  No per-tile XLU cross-lane reduce.
    for k in range(tq // 128):
        chunk = x_ref[:, :, k * 128:(k + 1) * 128].astype(jnp.float32)
        if mask_tail:
            # Zero out-of-range spatial positions (ragged last tile): OOB
            # block lanes are undefined, and the divisor below is the true HW.
            chunk = jnp.where(base + (k * 128) + lane < hw, chunk, 0.0)
        acc_ref[...] += chunk

    # Finalize on the last reduction tile: one cross-lane reduce + SE MLP.
    @pl.when(t == pl.num_programs(1) - 1)
    def _():
        pooled = jnp.sum(acc_ref[...], axis=-1) * inv_hw        # (TB, C) mean
        h = jnp.dot(pooled, w1_ref[...],
                    preferred_element_type=jnp.float32)         # (TB, Ch)
        h = jnp.maximum(h + b1_ref[...], 0.0)
        y = jnp.dot(h, w2_ref[...],
                    preferred_element_type=jnp.float32)         # (TB, C)
        y = jax.nn.sigmoid(y + b2_ref[...])
        out_ref[...] = y.reshape(out_ref.shape).astype(out_ref.dtype)


# ----------------------------- Tile selection ------------------------------ #
def _choose_tiles(B, C, HW, itemsize, tq_cap=None,
                  input_budget_bytes=16 * 1024 * 1024):
    """Pick (TB, TQ): TQ multiple of 128, double-buffered block fits budget."""
    hw_pad = _round_up(HW, 128)
    row128 = C * 128 * itemsize                      # one 128-lane chunk / row
    max_chunks = max(1, input_budget_bytes // (2 * row128))
    TQ = min(hw_pad, max_chunks * 128)
    if tq_cap is not None:
        TQ = min(TQ, _round_up(max(int(tq_cap), 128), 128))
    blk = C * TQ * itemsize
    TB = 1
    for cand in range(1, B + 1):                     # largest divisor that fits
        if B % cand == 0 and 2 * cand * blk <= input_budget_bytes:
            TB = cand
    return TB, TQ


# ------------------------------- Wrapper ----------------------------------- #
def se_layer_forward(x_nchw, params, *, tq=None):
    """SELayer.forward: returns the (B, C, 1, 1) sigmoid attention weights."""
    B, C, H, W = x_nchw.shape
    HW = H * W

    x = x_nchw.reshape(B, C, HW)            # free view: NCHW kept, HW on lanes

    itemsize = jnp.dtype(x_nchw.dtype).itemsize
    TB, TQ = _choose_tiles(B, C, HW, itemsize, tq_cap=tq)
    assert TQ % 128 == 0 and B % TB == 0
    n_b = B // TB
    n_t = pl.cdiv(HW, TQ)
    mask_tail = (HW % TQ) != 0

    # Pre-transpose weights once (row-vector MLP orientation, lane-dense in C).
    w1t = params['w1'].T                               # (C, Ch)
    b1r = params['b1'].reshape(1, -1)                  # (1, Ch)
    w2t = params['w2'].T                               # (Ch, C)
    b2r = params['b2'].reshape(1, -1)                  # (1, C)
    out_dtype = x_nchw.dtype

    def full_spec(a):
        nd = a.ndim
        return pl.BlockSpec(a.shape, lambda b, t, _nd=nd: (0,) * _nd)

    kernel = functools.partial(_se_kernel, hw=HW, tq=TQ,
                               mask_tail=mask_tail, inv_hw=1.0 / float(HW))

    # VMEM budget from the actual block sizes (double-buffered input/weights),
    # clamped well under v7x's 64 MiB physical VMEM.
    in_bytes = TB * C * TQ * itemsize
    w_bytes = sum(int(a.size) * jnp.dtype(a.dtype).itemsize
                  for a in (w1t, b1r, w2t, b2r))
    acc_bytes = TB * C * 128 * 4
    out_bytes = TB * C * jnp.dtype(out_dtype).itemsize
    need = 2 * in_bytes + 2 * w_bytes + acc_bytes + 2 * out_bytes
    vmem_limit = int(min(max(need + (8 << 20), 16 << 20), 48 << 20))

    out = pl.pallas_call(
        kernel,
        out_shape=jax.ShapeDtypeStruct((B, 1, C), out_dtype),
        grid=(n_b, n_t),
        in_specs=[
            pl.BlockSpec((TB, C, TQ), lambda b, t: (b, 0, t)),
            # Weight blocks never change index; default buffering keeps them
            # resident (no re-DMA). For very large C consider hoisting the MLP
            # out of the reduction grid entirely.
            full_spec(w1t), full_spec(b1r), full_spec(w2t), full_spec(b2r),
        ],
        out_specs=pl.BlockSpec((TB, 1, C), lambda b, t: (b, 0, 0)),
        scratch_shapes=[pltpu.VMEM((TB, C, 128), jnp.float32)],
        compiler_params=pltpu.CompilerParams(
            dimension_semantics=("parallel", "arbitrary"),
            vmem_limit_bytes=vmem_limit),
    )(x, w1t, b1r, w2t, b2r)

    return out.reshape(B, C, 1, 1)


# --------------------------- Parameter creation ---------------------------- #
def make_params(key, C, hidden=None):
    if hidden is None:
        hidden = max(C // 4, 1)
    k1, k2, k3, k4 = jax.random.split(key, 4)
    # PyTorch nn.Linear orientation: weight (out_features, in_features), bias (out,).
    return {
        'w1': 0.3 * jax.random.normal(k1, (hidden, C), jnp.float32),
        'b1': 0.1 * jax.random.normal(k2, (hidden,), jnp.float32),
        'w2': 0.3 * jax.random.normal(k3, (C, hidden), jnp.float32),
        'b2': 0.1 * jax.random.normal(k4, (C,), jnp.float32),
    }


# --------------------------- Pure-JAX reference ---------------------------- #
def ref_forward(x_nchw, params):
    B, C, _, _ = x_nchw.shape
    y = jnp.mean(x_nchw.astype(jnp.float32), axis=(2, 3))            # (B, C)
    h = jnp.maximum(y @ params['w1'].T + params['b1'], 0.0)          # (B, Ch)
    out = jax.nn.sigmoid(h @ params['w2'].T + params['b2'])          # (B, C)
    return out.reshape(B, C, 1, 1)


# ---------------------------------- Main ----------------------------------- #
if __name__ == "__main__":
    key = jax.random.PRNGKey(0)
    kx, kp = jax.random.split(key)

    # HW = 18*18 = 324 is NOT a multiple of 128 -> exercises the in-kernel
    # ragged-tail masking (no wrapper padding).
    B, C, H, W = 2, 16, 18, 18        # hidden = C // 4 = 4
    x = jax.random.normal(kx, (B, C, H, W), jnp.float32)
    params = make_params(kp, C)

    ref = ref_forward(x, params)

    # Default path: one big (batch-blocked) tile covering all of HW.
    out1 = jax.block_until_ready(se_layer_forward(x, params))
    # Forced small tile: multi-tile pipelined accumulation + ragged last tile.
    out2 = jax.block_until_ready(se_layer_forward(x, params, tq=128))

    for out in (out1, out2):
        assert out.shape == (B, C, 1, 1)
        err = float(jnp.max(jnp.abs(out.astype(jnp.float32) - ref)))
        assert err < 1e-4, f"max abs err {err}"
    print("KERNEL_OK")
</pallas_src>

<mosaic_0001>
module attributes {stable_mosaic.version = 11 : i64} {
  func.func @_se_kernel(%arg0: i32, %arg1: i32, %arg2: memref<2x16x384xf32, #tpu.memory_space<vmem>>, %arg3: memref<16x4xf32, #tpu.memory_space<vmem>>, %arg4: memref<1x4xf32, #tpu.memory_space<vmem>>, %arg5: memref<4x16xf32, #tpu.memory_space<vmem>>, %arg6: memref<1x16xf32, #tpu.memory_space<vmem>>, %arg7: memref<2x1x16xf32, #tpu.memory_space<vmem>>, %arg8: memref<2x16x128xf32, #tpu.memory_space<vmem>>) attributes {dimension_semantics = [#tpu.dimension_semantics<parallel>, #tpu.dimension_semantics<arbitrary>], iteration_bounds = array<i64: 1, 1>, scalar_prefetch = 0 : i64, scratch_operands = 1 : i64, tpu.core_type = #tpu.core_type<tc>, window_params = [{transform_indices = @transform_0, window_bounds = array<i64: 2, 16, 384>}, {pipeline_mode = #tpu.pipeline_mode<synchronous>, transform_indices = @transform_1, window_bounds = array<i64: 16, 4>}, {pipeline_mode = #tpu.pipeline_mode<synchronous>, transform_indices = @transform_2, window_bounds = array<i64: 1, 4>}, {pipeline_mode = #tpu.pipeline_mode<synchronous>, transform_indices = @transform_3, window_bounds = array<i64: 4, 16>}, {pipeline_mode = #tpu.pipeline_mode<synchronous>, transform_indices = @transform_4, window_bounds = array<i64: 1, 16>}, {transform_indices = @transform_5, window_bounds = array<i64: 2, 1, 16>}]} {
    %c0_i32 = arith.constant 0 : i32
    %0 = arith.cmpi eq, %arg1, %c0_i32 : i32
    %1 = arith.extui %0 : i1 to i32
    %c0_i32_0 = arith.constant 0 : i32
    %2 = arith.cmpi ne, %1, %c0_i32_0 : i32
    scf.if %2 {
      %cst_32 = arith.constant 0.000000e+00 : f32
      %41 = vector.broadcast %cst_32 : f32 to vector<2x16x128xf32>
      %c0_33 = arith.constant 0 : index
      %c0_34 = arith.constant 0 : index
      %c0_35 = arith.constant 0 : index
      %42 = vector.load %arg8[%c0_33, %c0_34, %c0_35] : memref<2x16x128xf32, #tpu.memory_space<vmem>>, vector<2x16x128xf32>
      tpu.vector_store %arg8[%c0_33, %c0_34, %c0_35], %41 {strides = array<i32>} : memref<2x16x128xf32, #tpu.memory_space<vmem>>, vector<2x16x128xf32>,
    } else {
    }
    %c384_i32 = arith.constant 384 : i32
    %3 = arith.muli %arg1, %c384_i32 : i32
    %4 = tpu.iota {dimensions = array<i32: 2>} : vector<2x16x128xi32>
    %c0 = arith.constant 0 : index
    %c0_1 = arith.constant 0 : index
    %c0_2 = arith.constant 0 : index
    %5 = vector.load %arg2[%c0, %c0_1, %c0_2] : memref<2x16x384xf32, #tpu.memory_space<vmem>>, vector<2x16x128xf32>
    %c0_i32_3 = arith.constant 0 : i32
    %6 = arith.addi %3, %c0_i32_3 : i32
    %7 = vector.broadcast %6 : i32 to vector<2x16x128xi32>
    %8 = arith.addi %7, %4 : vector<2x16x128xi32>
    %c324_i32 = arith.constant 324 : i32
    %9 = vector.broadcast %c324_i32 : i32 to vector<2x16x128xi32>
    %10 = arith.cmpi slt, %8, %9 : vector<2x16x128xi32>
    %cst = arith.constant 0.000000e+00 : f32
    %11 = vector.broadcast %cst : f32 to vector<2x16x128xf32>
    %12 = arith.select %10, %5, %11 : vector<2x16x128xi1>, vector<2x16x128xf32>
    %c0_4 = arith.constant 0 : index
    %c0_5 = arith.constant 0 : index
    %c0_6 = arith.constant 0 : index
    %13 = vector.load %arg8[%c0_4, %c0_5, %c0_6] : memref<2x16x128xf32, #tpu.memory_space<vmem>>, vector<2x16x128xf32>
    %14 = arith.addf %13, %12 : vector<2x16x128xf32>
    %c0_7 = arith.constant 0 : index
    %c0_8 = arith.constant 0 : index
    %c0_9 = arith.constant 0 : index
    %15 = vector.load %arg8[%c0_7, %c0_8, %c0_9] : memref<2x16x128xf32, #tpu.memory_space<vmem>>, vector<2x16x128xf32>
    tpu.vector_store %arg8[%c0_7, %c0_8, %c0_9], %14 {strides = array<i32>} : memref<2x16x128xf32, #tpu.memory_space<vmem>>, vector<2x16x128xf32>,
    %c0_10 = arith.constant 0 : index
    %c0_11 = arith.constant 0 : index
    %c128 = arith.constant 128 : index
    %16 = vector.load %arg2[%c0_10, %c0_11, %c128] : memref<2x16x384xf32, #tpu.memory_space<vmem>>, vector<2x16x128xf32>
    %c128_i32 = arith.constant 128 : i32
    %17 = arith.addi %3, %c128_i32 : i32
    %18 = vector.broadcast %17 : i32 to vector<2x16x128xi32>
    %19 = arith.addi %18, %4 : vector<2x16x128xi32>
    %c324_i32_12 = arith.constant 324 : i32
    %20 = vector.broadcast %c324_i32_12 : i32 to vector<2x16x128xi32>
    %21 = arith.cmpi slt, %19, %20 : vector<2x16x128xi32>
    %cst_13 = arith.constant 0.000000e+00 : f32
    %22 = vector.broadcast %cst_13 : f32 to vector<2x16x128xf32>
    %23 = arith.select %21, %16, %22 : vector<2x16x128xi1>, vector<2x16x128xf32>
    %c0_14 = arith.constant 0 : index
    %c0_15 = arith.constant 0 : index
    %c0_16 = arith.constant 0 : index
    %24 = vector.load %arg8[%c0_14, %c0_15, %c0_16] : memref<2x16x128xf32, #tpu.memory_space<vmem>>, vector<2x16x128xf32>
    %25 = arith.addf %24, %23 : vector<2x16x128xf32>
    %c0_17 = arith.constant 0 : index
    %c0_18 = arith.constant 0 : index
    %c0_19 = arith.constant 0 : index
    %26 = vector.load %arg8[%c0_17, %c0_18, %c0_19] : memref<2x16x128xf32, #tpu.memory_space<vmem>>, vector<2x16x128xf32>
    tpu.vector_store %arg8[%c0_17, %c0_18, %c0_19], %25 {strides = array<i32>} : memref<2x16x128xf32, #tpu.memory_space<vmem>>, vector<2x16x128xf32>,
    %c0_20 = arith.constant 0 : index
    %c0_21 = arith.constant 0 : index
    %c256 = arith.constant 256 : index
    %27 = vector.load %arg2[%c0_20, %c0_21, %c256] : memref<2x16x384xf32, #tpu.memory_space<vmem>>, vector<2x16x128xf32>
    %c256_i32 = arith.constant 256 : i32
    %28 = arith.addi %3, %c256_i32 : i32
    %29 = vector.broadcast %28 : i32 to vector<2x16x128xi32>
    %30 = arith.addi %29, %4 : vector<2x16x128xi32>
    %c324_i32_22 = arith.constant 324 : i32
    %31 = vector.broadcast %c324_i32_22 : i32 to vector<2x16x128xi32>
    %32 = arith.cmpi slt, %30, %31 : vector<2x16x128xi32>
    %cst_23 = arith.constant 0.000000e+00 : f32
    %33 = vector.broadcast %cst_23 : f32 to vector<2x16x128xf32>
    %34 = arith.select %32, %27, %33 : vector<2x16x128xi1>, vector<2x16x128xf32>
    %c0_24 = arith.constant 0 : index
    %c0_25 = arith.constant 0 : index
    %c0_26 = arith.constant 0 : index
    %35 = vector.load %arg8[%c0_24, %c0_25, %c0_26] : memref<2x16x128xf32, #tpu.memory_space<vmem>>, vector<2x16x128xf32>
    %36 = arith.addf %35, %34 : vector<2x16x128xf32>
    %c0_27 = arith.constant 0 : index
    %c0_28 = arith.constant 0 : index
    %c0_29 = arith.constant 0 : index
    %37 = vector.load %arg8[%c0_27, %c0_28, %c0_29] : memref<2x16x128xf32, #tpu.memory_space<vmem>>, vector<2x16x128xf32>
    tpu.vector_store %arg8[%c0_27, %c0_28, %c0_29], %36 {strides = array<i32>} : memref<2x16x128xf32, #tpu.memory_space<vmem>>, vector<2x16x128xf32>,
    %c0_i32_30 = arith.constant 0 : i32
    %38 = arith.cmpi eq, %arg1, %c0_i32_30 : i32
    %39 = arith.extui %38 : i1 to i32
    %c0_i32_31 = arith.constant 0 : i32
    %40 = arith.cmpi ne, %39, %c0_i32_31 : i32
    scf.if %40 {
      %c0_32 = arith.constant 0 : index
      %c0_33 = arith.constant 0 : index
      %c0_34 = arith.constant 0 : index
      %41 = vector.load %arg8[%c0_32, %c0_33, %c0_34] : memref<2x16x128xf32, #tpu.memory_space<vmem>>, vector<2x16x128xf32>
      %cst_35 = arith.constant dense<0.000000e+00> : vector<2x16xf32>
      %42 = vector.multi_reduction <add>, %41, %cst_35 [2] : vector<2x16x128xf32> to vector<2x16xf32>
      %cst_36 = arith.constant 0.00308641978 : f32
      %43 = vector.broadcast %cst_36 : f32 to vector<2x16xf32>
      %44 = arith.mulf %42, %43 : vector<2x16xf32>
      %c0_37 = arith.constant 0 : index
      %c0_38 = arith.constant 0 : index
      %45 = vector.load %arg3[%c0_37, %c0_38] : memref<16x4xf32, #tpu.memory_space<vmem>>, vector<16x4xf32>
      %cst_39 = arith.constant dense<0.000000e+00> : vector<2x4xf32>
      %46 = tpu.matmul %44, %45, %cst_39 {dimension_numbers = #tpu.dot_dimension_numbers<[1], [0], [0], [1], [0, 0, 1, 1], [], []>} : vector<2x16xf32>, vector<16x4xf32>, vector<2x4xf32> -> vector<2x4xf32>
      %c0_40 = arith.constant 0 : index
      %c0_41 = arith.constant 0 : index
      %47 = vector.load %arg4[%c0_40, %c0_41] : memref<1x4xf32, #tpu.memory_space<vmem>>, vector<1x4xf32>
      %48 = vector.broadcast %47 : vector<1x4xf32> to vector<2x4xf32>
      %49 = arith.addf %46, %48 : vector<2x4xf32>
      %cst_42 = arith.constant 0.000000e+00 : f32
      %50 = vector.broadcast %cst_42 : f32 to vector<2x4xf32>
      %51 = arith.maximumf %49, %50 : vector<2x4xf32>
      %c0_43 = arith.constant 0 : index
      %c0_44 = arith.constant 0 : index
      %52 = vector.load %arg5[%c0_43, %c0_44] : memref<4x16xf32, #tpu.memory_space<vmem>>, vector<4x16xf32>
      %cst_45 = arith.constant dense<0.000000e+00> : vector<2x16xf32>
      %53 = tpu.matmul %51, %52, %cst_45 {dimension_numbers = #tpu.dot_dimension_numbers<[1], [0], [0], [1], [0, 0, 1, 1], [], []>} : vector<2x4xf32>, vector<4x16xf32>, vector<2x16xf32> -> vector<2x16xf32>
      %c0_46 = arith.constant 0 : index
      %c0_47 = arith.constant 0 : index
      %54 = vector.load %arg6[%c0_46, %c0_47] : memref<1x16xf32, #tpu.memory_space<vmem>>, vector<1x16xf32>
      %55 = vector.broadcast %54 : vector<1x16xf32> to vector<2x16xf32>
      %56 = arith.addf %53, %55 : vector<2x16xf32>
      %57 = arith.negf %56 : vector<2x16xf32>
      %58 = math.exp %57 : vector<2x16xf32>
      %cst_48 = arith.constant 1.000000e+00 : f32
      %59 = vector.broadcast %cst_48 : f32 to vector<2x16xf32>
      %60 = arith.addf %59, %58 : vector<2x16xf32>
      %61 = arith.divf %59, %60 : vector<2x16xf32>
      %62 = vector.shape_cast %61 : vector<2x16xf32> to vector<2x1x16xf32>
      %c0_49 = arith.constant 0 : index
      %c0_50 = arith.constant 0 : index
      %c0_51 = arith.constant 0 : index
      %63 = vector.load %arg7[%c0_49, %c0_50, %c0_51] : memref<2x1x16xf32, #tpu.memory_space<vmem>>, vector<2x1x16xf32>
      tpu.vector_store %arg7[%c0_49, %c0_50, %c0_51], %62 {strides = array<i32>} : memref<2x1x16xf32, #tpu.memory_space<vmem>>, vector<2x1x16xf32>,
    } else {
    }
    return
  }
  func.func @transform_0(%arg0: i32, %arg1: i32) -> (i32, i32, i32) {
    %c0_i32 = arith.constant 0 : i32
    %c0_i32_0 = arith.constant 0 : i32
    return %arg0, %c0_i32, %arg1 : i32, i32, i32
  }
  func.func @transform_1(%arg0: i32, %arg1: i32) -> (i32, i32) {
    %c0_i32 = arith.constant 0 : i32
    %c0_i32_0 = arith.constant 0 : i32
    %c0_i32_1 = arith.constant 0 : i32
    return %c0_i32, %c0_i32_0 : i32, i32
  }
  func.func @transform_2(%arg0: i32, %arg1: i32) -> (i32, i32) {
    %c0_i32 = arith.constant 0 : i32
    %c0_i32_0 = arith.constant 0 : i32
    %c0_i32_1 = arith.constant 0 : i32
    return %c0_i32, %c0_i32_0 : i32, i32
  }
  func.func @transform_3(%arg0: i32, %arg1: i32) -> (i32, i32) {
    %c0_i32 = arith.constant 0 : i32
    %c0_i32_0 = arith.constant 0 : i32
    %c0_i32_1 = arith.constant 0 : i32
    return %c0_i32, %c0_i32_0 : i32, i32
  }
  func.func @transform_4(%arg0: i32, %arg1: i32) -> (i32, i32) {
    %c0_i32 = arith.constant 0 : i32
    %c0_i32_0 = arith.constant 0 : i32
    %c0_i32_1 = arith.constant 0 : i32
    return %c0_i32, %c0_i32_0 : i32, i32
  }
  func.func @transform_5(%arg0: i32, %arg1: i32) -> (i32, i32, i32) {
    %c0_i32 = arith.constant 0 : i32
    %c0_i32_0 = arith.constant 0 : i32
    %c0_i32_1 = arith.constant 0 : i32
    return %arg0, %c0_i32, %c0_i32_0 : i32, i32, i32
  }
}

</mosaic_0001>

<llo_original>
// kernel: tpu_custom_call.1
$region0: #{tpu_custom_call.1}
  #allocation0 [shape = 'u32[]', space=smem, size = 0x4, offset = 0x4, fixed_abs, tag = 'smem constant byte address 0x4 - core index']
  #allocation1 [shape = 'u32[72,128]{1,0:T(1,128)}', space=vmem, size = 0x9000, scoped, tag = 'internal scratch']
  #allocation2 [shape = 'f32[2,16,128]{2,1,0:T(8,128)}', space=vmem, size = 0x4000, scoped, tag = 'scratch operand']
  %s0 = inlined_call_operand.hbm [shape: f32[2,16,324], index: 0, kind: input, shape index: {}]
  %s1 = inlined_call_operand.vmem [shape: f32[16,4], index: 1, kind: input, shape index: {}]
  %s2 = inlined_call_operand.vmem [shape: f32[1,4], index: 2, kind: input, shape index: {}]
  %s3 = inlined_call_operand.vmem [shape: f32[4,16], index: 3, kind: input, shape index: {}]
  %s4 = inlined_call_operand.vmem [shape: f32[1,16], index: 4, kind: input, shape index: {}]
  %s5 = inlined_call_operand.hbm [shape: f32[2,1,16], index: 5, kind: output, shape index: {}]
  %s6 = sld [smem:[#allocation0]]
  $region42: #{tpu_custom_call.1} parent=0
    _
  %s8 = ssub.s32 1, %s6
  %s9 = scalar_select 0, %s8, %s6
  $region1: #{tpu_custom_call.1} parent=0
    #allocation3 [shape = 'u8[49152]{0}', space=vmem, size = 0xc000, scoped, tag = 'input window, operand 0, single buffered']
    #allocation4 [shape = 's32[1]{0}', space=sflag, size = 0x4, scoped, tag = 'scoped memory for tpu_custom_call.1']
    #allocation5 [shape = 's32[1]{0}', space=sflag, size = 0x4, scoped, tag = 'scoped memory for tpu_custom_call.1']
    #allocation6 [shape = 'u8[1024]{0}', space=vmem, size = 0x400, scoped, tag = 'output window, operand 0, single buffered']
    %10 = vsyncpa [#allocation4], 0
    %11 = vsyncpa [#allocation5], 0
    // Predicated region
    $region2: #{tpu_custom_call.1} parent=1 // pred_check
      _
    $region3: #{tpu_custom_call.1} parent=1 // pred_check_branch
      %13 = sbr.rel (0) target = $region5
    $region4: #{tpu_custom_call.1} parent=1 // pred_region
      %15 = vsyncadd [#allocation4], 0
      %s16 = sshll.u32 %s0, 4
      %s17 = int_to_ptr.hbm [resolvable:$true] %s16
      %s18 = sshll.u32 [#allocation3], 4
      %s19 = int_to_ptr.vmem [resolvable:$true] %s18
      %24 = dma.hbm_to_vmem [thread:$0]  %s17, 1536, %s19, [#allocation4], 384, 384, 24
    $region5: #{tpu_custom_call.1} parent=1 // pred_fallthru
      _
    // Predicated region
    $region6: #{tpu_custom_call.1} parent=1 // pred_check
      _
    $region7: #{tpu_custom_call.1} parent=1 // pred_check_branch
      %26 = sbr.rel (0) target = $region9
    $region8: #{tpu_custom_call.1} parent=1 // pred_region
      _
    $region9: #{tpu_custom_call.1} parent=1 // pred_fallthru
      _
    // Predicated region
    $region10: #{tpu_custom_call.1} parent=1 // pred_check
      _
    $region11: #{tpu_custom_call.1} parent=1 // pred_check_branch
      %28 = sbr.rel (0) target = $region13
    $region12: #{tpu_custom_call.1} parent=1 // pred_region
      _
    $region13: #{tpu_custom_call.1} parent=1 // pred_fallthru
      _
    // Predicated region
    $region14: #{tpu_custom_call.1} parent=1 // pred_check
      _
    $region15: #{tpu_custom_call.1} parent=1 // pred_check_branch
      %30 = sbr.rel (0) target = $region17
    $region16: #{tpu_custom_call.1} parent=1 // pred_region
      _
    $region17: #{tpu_custom_call.1} parent=1 // pred_fallthru
      _
    // Predicated region
    $region18: #{tpu_custom_call.1} parent=1 // pred_check
      _
    $region19: #{tpu_custom_call.1} parent=1 // pred_check_branch
      %32 = sbr.rel (0) target = $region21
    $region20: #{tpu_custom_call.1} parent=1 // pred_region
      _
    $region21: #{tpu_custom_call.1} parent=1 // pred_fallthru
      _
    // Predicated region
    $region22: #{tpu_custom_call.1} parent=1 // pred_check
      _
    $region23: #{tpu_custom_call.1} parent=1 // pred_check_branch
      %34 = sbr.rel (0) target = $region25
    $region24: #{tpu_custom_call.1} parent=1 // pred_region
      %36 = dma.done [#allocation4], 1536
    $region25: #{tpu_custom_call.1} parent=1 // pred_fallthru
      _
    %p37 = scmp.eq.s32.totalorder 0, 0
    // Predicated region
    $region26: #{tpu_custom_call.1} parent=1 // pred_check
      %p38 = pneg %p37
    $region27: #{tpu_custom_call.1} parent=1 // pred_check_branch
      %40 = sbr.rel (%p38) target = $region29
    $region28: #{tpu_custom_call.1} parent=1 // pred_region
      %41 = vst [vmem:[#allocation2] sm:$0xff] 0.0
      %42 = vst [vmem:[#allocation2 + $0x8] sm:$0xff] 0.0
      %43 = vst [vmem:[#allocation2 + $0x10] sm:$0xff] 0.0
      %44 = vst [vmem:[#allocation2 + $0x18] sm:$0xff] 0.0
    $region29: #{tpu_custom_call.1} parent=1 // pred_fallthru
      _
    %s45 = smul.u32 0, 384
    %v46 = vlaneseq
    %v47 = vand.u32 %v46, 127
    %v48 = vld [vmem:[#allocation3] sm:$0xff]
    %v49 = vld [vmem:[#allocation3 + $0x18] sm:$0xff]
    %v50 = vld [vmem:[#allocation3 + $0x30] sm:$0xff]
    %v51 = vld [vmem:[#allocation3 + $0x48] sm:$0xff]
    %v52 = vstv %s45
    %v53 = vadd.s32 %v52, %v47
    %vm54 = vcmp.lt.s32.totalorder %v53, 324
    %v55 = vsel %vm54, %v48, 0.0
    %v56 = vsel %vm54, %v49, 0.0
    %v57 = vsel %vm54, %v50, 0.0
    %v58 = vsel %vm54, %v51, 0.0
    %v59 = vld [vmem:[#allocation2] sm:$0xff]
    %v60 = vld [vmem:[#allocation2 + $0x8] sm:$0xff]
    %v61 = vld [vmem:[#allocation2 + $0x10] sm:$0xff]
    %v62 = vld [vmem:[#allocation2 + $0x18] sm:$0xff]
    %v63 = vadd.f32 %v59, %v55
    %v64 = vadd.f32 %v60, %v56
    %v65 = vadd.f32 %v61, %v57
    %v66 = vadd.f32 %v62, %v58
    %67 = vst [vmem:[#allocation2] sm:$0xff] %v63
    %68 = vst [vmem:[#allocation2 + $0x8] sm:$0xff] %v64
    %69 = vst [vmem:[#allocation2 + $0x10] sm:$0xff] %v65
    %70 = vst [vmem:[#allocation2 + $0x18] sm:$0xff] %v66
    %v71 = vld [vmem:[#allocation3 + $0x8] sm:$0xff]
    %v72 = vld [vmem:[#allocation3 + $0x20] sm:$0xff]
    %v73 = vld [vmem:[#allocation3 + $0x38] sm:$0xff]
    %v74 = vld [vmem:[#allocation3 + $0x50] sm:$0xff]
    %s75 = sadd.s32 %s45, 128
    %v76 = vstv %s75
    %v77 = vadd.s32 %v76, %v47
    %vm78 = vcmp.lt.s32.totalorder %v77, 324
    %v79 = vsel %vm78, %v71, 0.0
    %v80 = vsel %vm78, %v72, 0.0
    %v81 = vsel %vm78, %v73, 0.0
    %v82 = vsel %vm78, %v74, 0.0
    %v83 = vld [vmem:[#allocation2] sm:$0xff]
    %v84 = vld [vmem:[#allocation2 + $0x8] sm:$0xff]
    %v85 = vld [vmem:[#allocation2 + $0x10] sm:$0xff]
    %v86 = vld [vmem:[#allocation2 + $0x18] sm:$0xff]
    %v87 = vadd.f32 %v83, %v79
    %v88 = vadd.f32 %v84, %v80
    %v89 = vadd.f32 %v85, %v81
    %v90 = vadd.f32 %v86, %v82
    %91 = vst [vmem:[#allocation2] sm:$0xff] %v87
    %92 = vst [vmem:[#allocation2 + $0x8] sm:$0xff] %v88
    %93 = vst [vmem:[#allocation2 + $0x10] sm:$0xff] %v89
    %94 = vst [vmem:[#allocation2 + $0x18] sm:$0xff] %v90
    %v95 = vld [vmem:[#allocation3 + $0x10] sm:$0xff]
    %v96 = vld [vmem:[#allocation3 + $0x28] sm:$0xff]
    %v97 = vld [vmem:[#allocation3 + $0x40] sm:$0xff]
    %v98 = vld [vmem:[#allocation3 + $0x58] sm:$0xff]
    %s99 = sadd.s32 %s45, 256
    %v100 = vstv %s99
    %v101 = vadd.s32 %v100, %v47
    %vm102 = vcmp.lt.s32.totalorder %v101, 324
    %v103 = vsel %vm102, %v95, 0.0
    %v104 = vsel %vm102, %v96, 0.0
    %v105 = vsel %vm102, %v97, 0.0
    %v106 = vsel %vm102, %v98, 0.0
    %v107 = vld [vmem:[#allocation2] sm:$0xff]
    %v108 = vld [vmem:[#allocation2 + $0x8] sm:$0xff]
    %v109 = vld [vmem:[#allocation2 + $0x10] sm:$0xff]
    %v110 = vld [vmem:[#allocation2 + $0x18] sm:$0xff]
    %v111 = vadd.f32 %v107, %v103
    %v112 = vadd.f32 %v108, %v104
    %v113 = vadd.f32 %v109, %v105
    %v114 = vadd.f32 %v110, %v106
    %115 = vst [vmem:[#allocation2] sm:$0xff] %v111
    %116 = vst [vmem:[#allocation2 + $0x8] sm:$0xff] %v112
    %117 = vst [vmem:[#allocation2 + $0x10] sm:$0xff] %v113
    %118 = vst [vmem:[#allocation2 + $0x18] sm:$0xff] %v114
    // Predicated region
    $region30: #{tpu_custom_call.1} parent=1 // pred_check
      %p119 = pneg %p37
    $region31: #{tpu_custom_call.1} parent=1 // pred_check_branch
      %121 = sbr.rel (%p119) target = $region33
    $region32: #{tpu_custom_call.1} parent=1 // pred_region
      %v122 = vld [vmem:[#allocation2] sm:$0xff]
      %v123 = vld [vmem:[#allocation2 + $0x8] sm:$0xff]
      %v124 = vld [vmem:[#allocation2 + $0x10] sm:$0xff]
      %v125 = vld [vmem:[#allocation2 + $0x18] sm:$0xff]
      %126 = vadd.xlane.f32.xlu0 %v122
      %v127 = vpop.xlane.xlu0 %126
      %128 = vadd.xlane.f32.xlu0 %v123
      %v129 = vpop.xlane.xlu0 %128
      %130 = vadd.xlane.f32.xlu0 %v124
      %v131 = vpop.xlane.xlu0 %130
      %132 = vadd.xlane.f32.xlu0 %v125
      %v133 = vpop.xlane.xlu0 %132
      %v134 = vmul.f32 %v127, 0.0030864198
      %v135 = vmul.f32 %v129, 0.0030864198
      %v136 = vmul.f32 %v131, 0.0030864198
      %v137 = vmul.f32 %v133, 0.0030864198
      %v138 = vld [vmem:[%s1] sm:$0xff]
      %v139 = vld [vmem:[%s1 + $0x8] sm:$0xff]
      %v140 = vld [vmem:[%s2] sm:$0x1]
      %v142 = vperm.slane %v140, 0
      %v148 = vperm.slane %v134, %v47
      %v149 = vadd.s32 %v47, 4294967288
      %v150 = vperm.slane %v135, %v149
      %vm151 = vcmask 130112
      %v152 = vsel %vm151, %v150, %v148
      %v153 = vperm.slane %v136, %v47
      %v154 = vperm.slane %v137, %v149
      %v155 = vsel %vm151, %v154, %v153
      %vm156 = vcmask 1041409
      %v157 = vsel %vm156, %v155, %v152
      %vm158 = vcmask 130048
      %v159 = vsel %vm158, %v157, 0
      %161 = vmatpush.msra.mxu0 0.0
      %162 = vmatpush.msra.mxu0 0.0
      %163 = vmatpush.msra.mxu0 0.0
      %164 = vmatpush.msra.mxu0 0.0
      %165 = vmatpush.msra.mxu0 0.0
      %166 = vmatpush.msra.mxu0 0.0
      %167 = vmatpush.msra.mxu0 0.0
      %168 = vmatpush.msra.mxu0 0.0
      %169 = vmatpush.msra.mxu0 0.0
      %170 = vmatpush.msra.mxu0 0.0
      %171 = vmatpush.msra.mxu0 0.0
      %172 = vmatpush.msra.mxu0 0.0
      %173 = vmatpush.msra.mxu0 0.0
      %174 = vmatpush.msra.mxu0 0.0
      %175 = vmatpush.msra.mxu0 %v139
      %176 = vmatpush.msra.mxu0 %v138
      %177 = vmatmul.f32.gmra.mxu0 %v159
      %v178 = vpop.f32.mrf.mxu0
      %v179 = vadd.f32 %v142, %v178
      %180 = vdwg.mxu0
      %v181 = vmax.f32 %v179, 0.0
      %v182 = vld [vmem:[%s3] sm:$0xf]
      %v183 = vld [vmem:[%s4] sm:$0x1]
      %v185 = vperm.slane %v183, 0
      %vm187 = vcmask 31744
      %v189 = vsel %vm187, %v181, 0
      %vm191 = vcmask 1043456
      %v193 = vsel %vm191, %v182, 0
      %195 = vmatpush.msra.mxu0 0.0
      %196 = vmatpush.msra.mxu0 0.0
      %197 = vmatpush.msra.mxu0 0.0
      %198 = vmatpush.msra.mxu0 0.0
      %199 = vmatpush.msra.mxu0 0.0
      %200 = vmatpush.msra.mxu0 0.0
      %201 = vmatpush.msra.mxu0 0.0
      %202 = vmatpush.msra.mxu0 0.0
      %203 = vmatpush.msra.mxu0 0.0
      %204 = vmatpush.msra.mxu0 0.0
      %205 = vmatpush.msra.mxu0 0.0
      %206 = vmatpush.msra.mxu0 0.0
      %207 = vmatpush.msra.mxu0 0.0
      %208 = vmatpush.msra.mxu0 0.0
      %209 = vmatpush.msra.mxu0 0.0
      %210 = vmatpush.msra.mxu0 %v193
      %211 = vmatmul.f32.gmra.mxu0 %v189
      %v212 = vpop.f32.mrf.mxu0
      %v213 = vadd.f32 %v185, %v212
      %214 = vdwg.mxu0
      %v215 = vxor.u32 %v213, 2147483648
      %v216 = vmul.f32 %v215, 1.442695
      %v217 = vpow.pop %v216
      %v218 = vadd.f32 %v217, 1.0
      %v219 = vrcp.pop %v218
      %v220 = vmul.f32 %v218, %v219
      %v221 = vsub.f32 1.0, %v220
      %v222 = vmul.f32 %v219, %v221
      %v223 = vadd.f32 %v219, %v222
      %vm224 = vweird.f32 %v218
      %vm225 = vweird.f32 %v219
      %vm226 = vmor %vm224, %vm225
      %v227 = vsel %vm226, %v219, %v223
      %v228 = vand.u32 2147483647, %v218
      %vm229 = vcmp.eq.f32.partialorder %v228, 8.507059e+37
      %v230 = vand.u32 %v218, 2147483648
      %v231 = vor.u32 1.1754944e-38, %v230
      %v232 = vsel %vm229, %v231, %v227
      %v233 = vmul.f32 1.0, %v232
      %v235 = vrot.slane %v233, 1
      %vm237 = vcmask 122880
      %238 = vst.msk [vmem:[#allocation6] sm:$0x1] %vm237, %v233
      %239 = vst.msk [vmem:[#allocation6 + $0x1] sm:$0x1] %vm237, %v235
    $region33: #{tpu_custom_call.1} parent=1 // pred_fallthru
      _
    // Predicated region
    $region34: #{tpu_custom_call.1} parent=1 // pred_check
      _
    $region35: #{tpu_custom_call.1} parent=1 // pred_check_branch
      %241 = sbr.rel (0) target = $region37
    $region36: #{tpu_custom_call.1} parent=1 // pred_region
      %243 = vsyncadd [#allocation5], 0
      %s244 = sshll.u32 [#allocation6], 4
      %s245 = int_to_ptr.vmem [resolvable:$true] %s244
      %s246 = sshll.u32 %s5, 4
      %s247 = int_to_ptr.hbm [resolvable:$true] %s246
      %252 = dma.vmem_to_hbm [thread:$0]  %s245, 32, %s247, [#allocation5], 16, 16, 1
    $region37: #{tpu_custom_call.1} parent=1 // pred_fallthru
      _
    // Predicated region
    $region38: #{tpu_custom_call.1} parent=1 // pred_check
      _
    $region39: #{tpu_custom_call.1} parent=1 // pred_check_branch
      %254 = sbr.rel (0) target = $region41
    $region40: #{tpu_custom_call.1} parent=1 // pred_region
      %256 = dma.done [#allocation5], 32
    $region41: #{tpu_custom_call.1} parent=1 // pred_fallthru
      _
    %257 = vsyncpa [#allocation4], 1
    %258 = vsyncpa [#allocation5], 1

</llo_original>
